<compile_context>
chip_gen: v7x
topology: tpu7x:2x2x1
jax: 0.10.0
libtpu: 0.0.40
codegen_flags: <defaults>
</compile_context>

<pallas_src>
import functools

import jax
import jax.numpy as jnp
from jax.experimental import pallas as pl
from jax.experimental.pallas import tpu as pltpu

_LANE = 128      # vreg lane width (feature dims padded to this *inside* VMEM only)
_SUBLANE = 8     # f32 sublane width: batch tile must be a multiple of this


def _round_up(x, m):
    return ((x + m - 1) // m) * m


def _pad2d(a, rows, cols):
    return jnp.pad(a, ((0, rows - a.shape[0]), (0, cols - a.shape[1])))


def _mlp_kernel(n_layers, d_in, x_ref, *refs):
    """Fused MLP forward on one batch tile.

    refs = (W0, b0, ..., W_{L-1}, b_{L-1}, out, pad_scratch).
    Weights are lane-padded (Kpad, Npad) in the MXU compute dtype; biases are
    (1, Npad) f32.  x and out keep their natural narrow feature widths in HBM;
    lane padding / narrowing is done here through the VMEM scratch so every
    matmul is (8,128)-aligned.  (Activations do round-trip through VMEM for
    large tiles — vreg pressure is not the binding resource here.)
    """
    *param_refs, o_ref, pad_ref = refs
    d_out = o_ref.shape[-1]
    d_in_pad = param_refs[0].shape[0]        # round_up(d_in, 128)
    d_last_pad = param_refs[-2].shape[-1]    # round_up(d_out, 128)

    # Lane-pad the (tm, d_in) input tile to (tm, d_in_pad).  Re-zeroed every
    # step: the scratch is reused as the output staging buffer below, and with
    # a megacore-parallel grid a "zero once at program_id==0" init would not
    # run on every core.
    pad_ref[...] = jnp.zeros_like(pad_ref)
    pad_ref[:, :d_in] = x_ref[...]
    h = pad_ref[:, :d_in_pad]

    for i in range(n_layers):
        w_ref = param_refs[2 * i]            # (Kpad, Npad), compute dtype
        b = param_refs[2 * i + 1][...]       # (1, Npad), f32
        z = jnp.dot(h.astype(w_ref.dtype), w_ref[...],
                    preferred_element_type=jnp.float32) + b
        if i < n_layers - 1:
            h = jnp.maximum(z, 0.0)          # ReLU on hidden layers (VALU, f32)
        else:
            # Tanh (EUP, f32), then stage the lane-padded result in VMEM and
            # masked-load only the first d_out lanes for the narrow HBM block.
            pad_ref[:, :d_last_pad] = jnp.tanh(z)
            o_ref[...] = pad_ref[:, :d_out].astype(o_ref.dtype)


def prepare_params(params, compute_dtype=jnp.bfloat16):
    """One-time weight prep: lane-pad and cast the MXU operands.

    params: list of (W: (d_in, d_out), b: (d_out,) or (1, d_out)) f32.
    Returns (flat, dims) where flat = (W0, b0, W1, b1, ...) padded arrays and
    dims = tuple of original layer widths (static metadata for mlp_forward).
    """
    dims = (params[0][0].shape[0],) + tuple(w.shape[1] for w, _ in params)
    flat = []
    for l, (w, b) in enumerate(params):
        kp = _round_up(dims[l], _LANE)
        np_ = _round_up(dims[l + 1], _LANE)
        flat.append(_pad2d(jnp.asarray(w, jnp.float32), kp, np_)
                    .astype(compute_dtype))
        b2 = jnp.asarray(b, jnp.float32).reshape(1, -1)
        flat.append(_pad2d(b2, 1, np_))      # bias stays f32 (epilogue on VPU)
    return tuple(flat), dims


@functools.partial(jax.jit, static_argnames=("dims", "tile_m"))
def mlp_forward(x, flat, *, dims, tile_m=2048):
    """x: (B, d_in) f32; flat/dims from prepare_params. Returns (B, d_out) f32."""
    B, d_in = x.shape
    assert d_in == dims[0], "input width does not match prepared params"
    n_layers = len(dims) - 1
    d_out = dims[-1]
    d_in_pad = _round_up(d_in, _LANE)
    d_last_pad = _round_up(d_out, _LANE)

    # Batch tile: large to amortize ~0.35us/grid-step overhead, multiple of 8
    # sublanes, and capped at ~B/2 so large batches give >=2 grid steps (two
    # v7x TensorCores can then share the "parallel" batch axis).
    tm_req = max(_SUBLANE, _round_up(tile_m, _SUBLANE))
    half = max(_SUBLANE, _round_up((B + 1) // 2, _SUBLANE))
    tm = min(tm_req, half)

    b_pad = _round_up(B, tm)
    x_in = x if b_pad == B else jnp.pad(x, ((0, b_pad - B), (0, 0)))

    # x/out walk the batch grid with their natural (narrow) feature widths;
    # weights/biases use a constant index_map so they stay VMEM-resident.
    in_specs = [pl.BlockSpec((tm, d_in), lambda i: (i, 0))]
    for l in range(n_layers):
        kp = _round_up(dims[l], _LANE)
        np_ = _round_up(dims[l + 1], _LANE)
        in_specs.append(pl.BlockSpec((kp, np_), lambda i: (0, 0)))
        in_specs.append(pl.BlockSpec((1, np_), lambda i: (0, 0)))

    scratch_lanes = max(d_in_pad, d_last_pad)
    kernel = functools.partial(_mlp_kernel, n_layers, d_in)

    out_p = pl.pallas_call(
        kernel,
        out_shape=jax.ShapeDtypeStruct((b_pad, d_out), jnp.float32),
        grid_spec=pltpu.PrefetchScalarGridSpec(
            num_scalar_prefetch=0,
            grid=(b_pad // tm,),
            in_specs=in_specs,
            out_specs=pl.BlockSpec((tm, d_out), lambda i: (i, 0)),
            scratch_shapes=[pltpu.VMEM((tm, scratch_lanes), jnp.float32)],
        ),
        compiler_params=pltpu.CompilerParams(
            dimension_semantics=("parallel",)),
    )(x_in, *flat)

    return out_p if b_pad == B else out_p[:B]


def init_mlp_params(key, dim_layers):
    """Deterministic init matching the shapes implied by MLP(dim_layers)."""
    params = []
    for l in range(len(dim_layers) - 1):
        d_in, d_out = dim_layers[l], dim_layers[l + 1]
        key, kw, kb = jax.random.split(key, 3)
        # PyTorch nn.Linear default: U(-1/sqrt(d_in), 1/sqrt(d_in))
        bound = 1.0 / jnp.sqrt(jnp.float32(d_in))
        w = jax.random.uniform(kw, (d_in, d_out), jnp.float32, -bound, bound)
        b = jax.random.uniform(kb, (1, d_out), jnp.float32, -bound, bound)
        params.append((w, b))
    return params


def mlp_reference(x, params):
    """Pure-JAX reference for correctness check."""
    h = x
    n = len(params)
    for i, (w, b) in enumerate(params):
        h = h @ w + b
        h = jnp.maximum(h, 0.0) if i < n - 1 else jnp.tanh(h)
    return h


if __name__ == "__main__":
    key = jax.random.PRNGKey(0)
    dim_layers = [4, 32, 32, 3]     # two LinearReLU blocks + final Linear + Tanh
    batch = 8

    key, kx = jax.random.split(key)
    x = jax.random.normal(kx, (batch, dim_layers[0]), jnp.float32)
    params = init_mlp_params(key, dim_layers)
    ref = mlp_reference(x, params)

    # Exact f32-MXU path (tight tolerance vs reference).
    flat32, dims = prepare_params(params, compute_dtype=jnp.float32)
    out = jax.block_until_ready(mlp_forward(x, flat32, dims=dims))
    assert out.shape == (batch, dim_layers[-1])
    assert jnp.allclose(out, ref, atol=1e-5, rtol=1e-5), "f32 mismatch vs reference"

    # Default bf16-MXU path (weights bf16, f32 epilogue; looser tolerance).
    flat16, _ = prepare_params(params)
    out16 = jax.block_until_ready(mlp_forward(x, flat16, dims=dims))
    assert jnp.allclose(out16, ref, atol=5e-2, rtol=5e-2), "bf16 mismatch"

    # Multi-tile grid path (>=2 grid steps; exercises batch tiling + parallel).
    key, kx2 = jax.random.split(key)
    x_big = jax.random.normal(kx2, (1024, dim_layers[0]), jnp.float32)
    out_big = jax.block_until_ready(mlp_forward(x_big, flat32, dims=dims))
    ref_big = mlp_reference(x_big, params)
    assert out_big.shape == (1024, dim_layers[-1])
    assert jnp.allclose(out_big, ref_big, atol=1e-5, rtol=1e-5), "tiled mismatch"

    print("KERNEL_OK")
</pallas_src>

<mosaic_0001>
module attributes {stable_mosaic.version = 11 : i64} {
  func.func @_mlp_kernel(%arg0: i32, %arg1: memref<8x4xf32, #tpu.memory_space<vmem>>, %arg2: memref<128x128xf32, #tpu.memory_space<vmem>>, %arg3: memref<1x128xf32, #tpu.memory_space<vmem>>, %arg4: memref<128x128xf32, #tpu.memory_space<vmem>>, %arg5: memref<1x128xf32, #tpu.memory_space<vmem>>, %arg6: memref<128x128xf32, #tpu.memory_space<vmem>>, %arg7: memref<1x128xf32, #tpu.memory_space<vmem>>, %arg8: memref<8x3xf32, #tpu.memory_space<vmem>>, %arg9: memref<8x128xf32, #tpu.memory_space<vmem>>) attributes {dimension_semantics = [#tpu.dimension_semantics<parallel>], iteration_bounds = array<i64: 1>, scalar_prefetch = 0 : i64, scratch_operands = 1 : i64, tpu.core_type = #tpu.core_type<tc>, window_params = [{transform_indices = @transform_0, window_bounds = array<i64: 8, 4>}, {pipeline_mode = #tpu.pipeline_mode<synchronous>, transform_indices = @transform_1, window_bounds = array<i64: 128, 128>}, {pipeline_mode = #tpu.pipeline_mode<synchronous>, transform_indices = @transform_2, window_bounds = array<i64: 1, 128>}, {pipeline_mode = #tpu.pipeline_mode<synchronous>, transform_indices = @transform_3, window_bounds = array<i64: 128, 128>}, {pipeline_mode = #tpu.pipeline_mode<synchronous>, transform_indices = @transform_4, window_bounds = array<i64: 1, 128>}, {pipeline_mode = #tpu.pipeline_mode<synchronous>, transform_indices = @transform_5, window_bounds = array<i64: 128, 128>}, {pipeline_mode = #tpu.pipeline_mode<synchronous>, transform_indices = @transform_6, window_bounds = array<i64: 1, 128>}, {transform_indices = @transform_7, window_bounds = array<i64: 8, 3>}]} {
    %cst = arith.constant 0.000000e+00 : f32
    %0 = vector.broadcast %cst : f32 to vector<8x128xf32>
    %c0 = arith.constant 0 : index
    %c0_0 = arith.constant 0 : index
    %1 = vector.load %arg9[%c0, %c0_0] : memref<8x128xf32, #tpu.memory_space<vmem>>, vector<8x128xf32>
    tpu.vector_store %arg9[%c0, %c0_0], %0 {strides = array<i32>} : memref<8x128xf32, #tpu.memory_space<vmem>>, vector<8x128xf32>,
    %c0_1 = arith.constant 0 : index
    %c0_2 = arith.constant 0 : index
    %2 = vector.load %arg1[%c0_1, %c0_2] : memref<8x4xf32, #tpu.memory_space<vmem>>, vector<8x4xf32>
    %c0_3 = arith.constant 0 : index
    %c0_4 = arith.constant 0 : index
    %3 = vector.load %arg9[%c0_3, %c0_4] : memref<8x128xf32, #tpu.memory_space<vmem>>, vector<8x4xf32>
    tpu.vector_store %arg9[%c0_3, %c0_4], %2 {strides = array<i32>} : memref<8x128xf32, #tpu.memory_space<vmem>>, vector<8x4xf32>,
    %c0_5 = arith.constant 0 : index
    %c0_6 = arith.constant 0 : index
    %4 = vector.load %arg9[%c0_5, %c0_6] : memref<8x128xf32, #tpu.memory_space<vmem>>, vector<8x128xf32>
    %c0_7 = arith.constant 0 : index
    %c0_8 = arith.constant 0 : index
    %5 = vector.load %arg3[%c0_7, %c0_8] : memref<1x128xf32, #tpu.memory_space<vmem>>, vector<1x128xf32>
    %c0_9 = arith.constant 0 : index
    %c0_10 = arith.constant 0 : index
    %6 = vector.load %arg2[%c0_9, %c0_10] : memref<128x128xf32, #tpu.memory_space<vmem>>, vector<128x128xf32>
    %cst_11 = arith.constant dense<0.000000e+00> : vector<8x128xf32>
    %7 = tpu.matmul %4, %6, %cst_11 {dimension_numbers = #tpu.dot_dimension_numbers<[1], [0], [0], [1], [0, 0, 1, 1], [], []>} : vector<8x128xf32>, vector<128x128xf32>, vector<8x128xf32> -> vector<8x128xf32>
    %8 = vector.broadcast %5 : vector<1x128xf32> to vector<8x128xf32>
    %9 = arith.addf %7, %8 : vector<8x128xf32>
    %cst_12 = arith.constant 0.000000e+00 : f32
    %10 = vector.broadcast %cst_12 : f32 to vector<8x128xf32>
    %11 = arith.maximumf %9, %10 : vector<8x128xf32>
    %c0_13 = arith.constant 0 : index
    %c0_14 = arith.constant 0 : index
    %12 = vector.load %arg5[%c0_13, %c0_14] : memref<1x128xf32, #tpu.memory_space<vmem>>, vector<1x128xf32>
    %c0_15 = arith.constant 0 : index
    %c0_16 = arith.constant 0 : index
    %13 = vector.load %arg4[%c0_15, %c0_16] : memref<128x128xf32, #tpu.memory_space<vmem>>, vector<128x128xf32>
    %cst_17 = arith.constant dense<0.000000e+00> : vector<8x128xf32>
    %14 = tpu.matmul %11, %13, %cst_17 {dimension_numbers = #tpu.dot_dimension_numbers<[1], [0], [0], [1], [0, 0, 1, 1], [], []>} : vector<8x128xf32>, vector<128x128xf32>, vector<8x128xf32> -> vector<8x128xf32>
    %15 = vector.broadcast %12 : vector<1x128xf32> to vector<8x128xf32>
    %16 = arith.addf %14, %15 : vector<8x128xf32>
    %cst_18 = arith.constant 0.000000e+00 : f32
    %17 = vector.broadcast %cst_18 : f32 to vector<8x128xf32>
    %18 = arith.maximumf %16, %17 : vector<8x128xf32>
    %c0_19 = arith.constant 0 : index
    %c0_20 = arith.constant 0 : index
    %19 = vector.load %arg7[%c0_19, %c0_20] : memref<1x128xf32, #tpu.memory_space<vmem>>, vector<1x128xf32>
    %c0_21 = arith.constant 0 : index
    %c0_22 = arith.constant 0 : index
    %20 = vector.load %arg6[%c0_21, %c0_22] : memref<128x128xf32, #tpu.memory_space<vmem>>, vector<128x128xf32>
    %cst_23 = arith.constant dense<0.000000e+00> : vector<8x128xf32>
    %21 = tpu.matmul %18, %20, %cst_23 {dimension_numbers = #tpu.dot_dimension_numbers<[1], [0], [0], [1], [0, 0, 1, 1], [], []>} : vector<8x128xf32>, vector<128x128xf32>, vector<8x128xf32> -> vector<8x128xf32>
    %22 = vector.broadcast %19 : vector<1x128xf32> to vector<8x128xf32>
    %23 = arith.addf %21, %22 : vector<8x128xf32>
    %24 = math.tanh %23 : vector<8x128xf32>
    %c0_24 = arith.constant 0 : index
    %c0_25 = arith.constant 0 : index
    %25 = vector.load %arg9[%c0_24, %c0_25] : memref<8x128xf32, #tpu.memory_space<vmem>>, vector<8x128xf32>
    tpu.vector_store %arg9[%c0_24, %c0_25], %24 {strides = array<i32>} : memref<8x128xf32, #tpu.memory_space<vmem>>, vector<8x128xf32>,
    %c0_26 = arith.constant 0 : index
    %c0_27 = arith.constant 0 : index
    %26 = vector.load %arg9[%c0_26, %c0_27] : memref<8x128xf32, #tpu.memory_space<vmem>>, vector<8x3xf32>
    %c0_28 = arith.constant 0 : index
    %c0_29 = arith.constant 0 : index
    %27 = vector.load %arg8[%c0_28, %c0_29] : memref<8x3xf32, #tpu.memory_space<vmem>>, vector<8x3xf32>
    tpu.vector_store %arg8[%c0_28, %c0_29], %26 {strides = array<i32>} : memref<8x3xf32, #tpu.memory_space<vmem>>, vector<8x3xf32>,
    return
  }
  func.func @transform_0(%arg0: i32) -> (i32, i32) {
    %c0_i32 = arith.constant 0 : i32
    %c0_i32_0 = arith.constant 0 : i32
    return %arg0, %c0_i32 : i32, i32
  }
  func.func @transform_1(%arg0: i32) -> (i32, i32) {
    %c0_i32 = arith.constant 0 : i32
    %c0_i32_0 = arith.constant 0 : i32
    %c0_i32_1 = arith.constant 0 : i32
    return %c0_i32, %c0_i32_0 : i32, i32
  }
  func.func @transform_2(%arg0: i32) -> (i32, i32) {
    %c0_i32 = arith.constant 0 : i32
    %c0_i32_0 = arith.constant 0 : i32
    %c0_i32_1 = arith.constant 0 : i32
    return %c0_i32, %c0_i32_0 : i32, i32
  }
  func.func @transform_3(%arg0: i32) -> (i32, i32) {
    %c0_i32 = arith.constant 0 : i32
    %c0_i32_0 = arith.constant 0 : i32
    %c0_i32_1 = arith.constant 0 : i32
    return %c0_i32, %c0_i32_0 : i32, i32
  }
  func.func @transform_4(%arg0: i32) -> (i32, i32) {
    %c0_i32 = arith.constant 0 : i32
    %c0_i32_0 = arith.constant 0 : i32
    %c0_i32_1 = arith.constant 0 : i32
    return %c0_i32, %c0_i32_0 : i32, i32
  }
  func.func @transform_5(%arg0: i32) -> (i32, i32) {
    %c0_i32 = arith.constant 0 : i32
    %c0_i32_0 = arith.constant 0 : i32
    %c0_i32_1 = arith.constant 0 : i32
    return %c0_i32, %c0_i32_0 : i32, i32
  }
  func.func @transform_6(%arg0: i32) -> (i32, i32) {
    %c0_i32 = arith.constant 0 : i32
    %c0_i32_0 = arith.constant 0 : i32
    %c0_i32_1 = arith.constant 0 : i32
    return %c0_i32, %c0_i32_0 : i32, i32
  }
  func.func @transform_7(%arg0: i32) -> (i32, i32) {
    %c0_i32 = arith.constant 0 : i32
    %c0_i32_0 = arith.constant 0 : i32
    return %arg0, %c0_i32 : i32, i32
  }
}

</mosaic_0001>

<llo_original>
// kernel: mlp_forward.1
$region0: #{mlp_forward.1}
  #allocation0 [shape = 'u32[]', space=smem, size = 0x4, offset = 0x4, fixed_abs, tag = 'smem constant byte address 0x4 - core index']
  #allocation1 [shape = 'u32[144,128]{1,0:T(1,128)}', space=vmem, size = 0x12000, scoped, tag = 'internal scratch']
  #allocation2 [shape = 'f32[8,128]{1,0:T(8,128)}', space=vmem, size = 0x1000, scoped, tag = 'scratch operand']
  %s0 = inlined_call_operand.vmem [shape: f32[8,4], index: 0, kind: input, shape index: {}]
  %s1 = inlined_call_operand.hbm [shape: f32[128,128], index: 1, kind: input, shape index: {}]
  %s2 = inlined_call_operand.vmem [shape: f32[1,128], index: 2, kind: input, shape index: {}]
  %s3 = inlined_call_operand.hbm [shape: f32[128,128], index: 3, kind: input, shape index: {}]
  %s4 = inlined_call_operand.vmem [shape: f32[1,128], index: 4, kind: input, shape index: {}]
  %s5 = inlined_call_operand.hbm [shape: f32[128,128], index: 5, kind: input, shape index: {}]
  %s6 = inlined_call_operand.vmem [shape: f32[1,128], index: 6, kind: input, shape index: {}]
  %s7 = inlined_call_operand.vmem [shape: f32[8,3], index: 7, kind: output, shape index: {}]
  %s8 = sld [smem:[#allocation0]]
  $region50: #{mlp_forward.1} parent=0
    _
  %s10 = ssub.s32 1, %s8
  %s11 = scalar_select 0, %s10, %s8
  $region1: #{mlp_forward.1} parent=0
    #allocation3 [shape = 'u8[65536]{0}', space=vmem, size = 0x10000, scoped, tag = 'input window, operand 1, single buffered']
    #allocation4 [shape = 's32[1]{0}', space=sflag, size = 0x4, scoped, tag = 'scoped memory for mlp_forward.1']
    #allocation5 [shape = 'u8[65536]{0}', space=vmem, size = 0x10000, scoped, tag = 'input window, operand 3, single buffered']
    #allocation6 [shape = 's32[1]{0}', space=sflag, size = 0x4, scoped, tag = 'scoped memory for mlp_forward.1']
    #allocation7 [shape = 'u8[65536]{0}', space=vmem, size = 0x10000, scoped, tag = 'input window, operand 5, single buffered']
    %12 = vsyncpa [#allocation4], 0
    %13 = vsyncpa [#allocation6], 0
    // Predicated region
    $region2: #{mlp_forward.1} parent=1 // pred_check
      _
    $region3: #{mlp_forward.1} parent=1 // pred_check_branch
      %15 = sbr.rel (0) target = $region5
    $region4: #{mlp_forward.1} parent=1 // pred_region
      _
    $region5: #{mlp_forward.1} parent=1 // pred_fallthru
      _
    // Predicated region
    $region6: #{mlp_forward.1} parent=1 // pred_check
      _
    $region7: #{mlp_forward.1} parent=1 // pred_check_branch
      %17 = sbr.rel (0) target = $region9
    $region8: #{mlp_forward.1} parent=1 // pred_region
      %s19 = ssub.s32 2048, 2048
      %20 = vsyncadd [#allocation4], %s19
      %s21 = sshll.u32 [#allocation3], 4
      %s22 = int_to_ptr.vmem [resolvable:$true] %s21
      %27 = dma.hbm_to_vmem [thread:$0]  %s1, 2048, %s22, [#allocation4], 128, 128, 8
    $region9: #{mlp_forward.1} parent=1 // pred_fallthru
      _
    // Predicated region
    $region10: #{mlp_forward.1} parent=1 // pred_check
      _
    $region11: #{mlp_forward.1} parent=1 // pred_check_branch
      %29 = sbr.rel (0) target = $region13
    $region12: #{mlp_forward.1} parent=1 // pred_region
      _
    $region13: #{mlp_forward.1} parent=1 // pred_fallthru
      _
    // Predicated region
    $region14: #{mlp_forward.1} parent=1 // pred_check
      _
    $region15: #{mlp_forward.1} parent=1 // pred_check_branch
      %31 = sbr.rel (0) target = $region17
    $region16: #{mlp_forward.1} parent=1 // pred_region
      %s33 = ssub.s32 2048, 2048
      %34 = vsyncadd [#allocation6], %s33
      %s35 = sshll.u32 [#allocation5], 4
      %s36 = int_to_ptr.vmem [resolvable:$true] %s35
      %41 = dma.hbm_to_vmem [thread:$0]  %s3, 2048, %s36, [#allocation6], 128, 128, 8
    $region17: #{mlp_forward.1} parent=1 // pred_fallthru
      _
    // Predicated region
    $region18: #{mlp_forward.1} parent=1 // pred_check
      _
    $region19: #{mlp_forward.1} parent=1 // pred_check_branch
      %43 = sbr.rel (0) target = $region21
    $region20: #{mlp_forward.1} parent=1 // pred_region
      _
    $region21: #{mlp_forward.1} parent=1 // pred_fallthru
      _
    // Predicated region
    $region22: #{mlp_forward.1} parent=1 // pred_check
      _
    $region23: #{mlp_forward.1} parent=1 // pred_check_branch
      %45 = sbr.rel (0) target = $region25
    $region24: #{mlp_forward.1} parent=1 // pred_region
      %s47 = ssub.s32 2048, 2048
      %48 = vsyncadd [#allocation6], %s47
      %s49 = sshll.u32 [#allocation7], 4
      %s50 = int_to_ptr.vmem [resolvable:$true] %s49
      %55 = dma.hbm_to_vmem [thread:$0]  %s5, 2048, %s50, [#allocation6], 128, 128, 8
    $region25: #{mlp_forward.1} parent=1 // pred_fallthru
      _
    // Predicated region
    $region26: #{mlp_forward.1} parent=1 // pred_check
      _
    $region27: #{mlp_forward.1} parent=1 // pred_check_branch
      %57 = sbr.rel (0) target = $region29
    $region28: #{mlp_forward.1} parent=1 // pred_region
      _
    $region29: #{mlp_forward.1} parent=1 // pred_fallthru
      _
    // Predicated region
    $region30: #{mlp_forward.1} parent=1 // pred_check
      _
    $region31: #{mlp_forward.1} parent=1 // pred_check_branch
      %59 = sbr.rel (0) target = $region33
    $region32: #{mlp_forward.1} parent=1 // pred_region
      %60 = dma.done [#allocation4], 2048
    $region33: #{mlp_forward.1} parent=1 // pred_fallthru
      _
    // Predicated region
    $region34: #{mlp_forward.1} parent=1 // pred_check
      _
    $region35: #{mlp_forward.1} parent=1 // pred_check_branch
      %62 = sbr.rel (0) target = $region37
    $region36: #{mlp_forward.1} parent=1 // pred_region
      %63 = dma.done [#allocation6], 2048
    $region37: #{mlp_forward.1} parent=1 // pred_fallthru
      _
    // Predicated region
    $region38: #{mlp_forward.1} parent=1 // pred_check
      _
    $region39: #{mlp_forward.1} parent=1 // pred_check_branch
      %65 = sbr.rel (0) target = $region41
    $region40: #{mlp_forward.1} parent=1 // pred_region
      %66 = dma.done [#allocation6], 2048
    $region41: #{mlp_forward.1} parent=1 // pred_fallthru
      _
    %67 = vst [vmem:[#allocation2] sm:$0xff] 0.0
    %v68 = vld [vmem:[%s0] sm:$0xff]
    %vm69 = vcmask 31744
    %70 = vst.msk [vmem:[#allocation2] sm:$0xff] %vm69, %v68
    %v71 = vld [vmem:[#allocation2] sm:$0xff]
    %v72 = vld [vmem:[%s2] sm:$0x1]
    %v73 = vld [vmem:[#allocation3] sm:$0xff]
    %v74 = vld [vmem:[#allocation3 + $0x8] sm:$0xff]
    %v75 = vld [vmem:[#allocation3 + $0x10] sm:$0xff]
    %v76 = vld [vmem:[#allocation3 + $0x18] sm:$0xff]
    %v77 = vld [vmem:[#allocation3 + $0x20] sm:$0xff]
    %v78 = vld [vmem:[#allocation3 + $0x28] sm:$0xff]
    %v79 = vld [vmem:[#allocation3 + $0x30] sm:$0xff]
    %v80 = vld [vmem:[#allocation3 + $0x38] sm:$0xff]
    %v81 = vld [vmem:[#allocation3 + $0x40] sm:$0xff]
    %v82 = vld [vmem:[#allocation3 + $0x48] sm:$0xff]
    %v83 = vld [vmem:[#allocation3 + $0x50] sm:$0xff]
    %v84 = vld [vmem:[#allocation3 + $0x58] sm:$0xff]
    %v85 = vld [vmem:[#allocation3 + $0x60] sm:$0xff]
    %v86 = vld [vmem:[#allocation3 + $0x68] sm:$0xff]
    %v87 = vld [vmem:[#allocation3 + $0x70] sm:$0xff]
    %v88 = vld [vmem:[#allocation3 + $0x78] sm:$0xff]
    %v90 = vlaneseq
    %v91 = vshrl.u32 %v90, 7
    %v92 = vsub.s32 0, %v91
    %v93 = vrot.slane %v72, %v92
    %95 = vmatprep.subr.mxu0 0.0
    %96 = vmatpush1.msra.mxu0 %v73
    %97 = vmatprep.subr.mxu0 0.0
    %98 = vmatpush1.msra.mxu0 %v74
    %99 = vmatprep.subr.mxu0 0.0
    %100 = vmatpush1.msra.mxu0 %v75
    %101 = vmatprep.subr.mxu0 0.0
    %102 = vmatpush1.msra.mxu0 %v76
    %103 = vmatprep.subr.mxu0 0.0
    %104 = vmatpush1.msra.mxu0 %v77
    %105 = vmatprep.subr.mxu0 0.0
    %106 = vmatpush1.msra.mxu0 %v78
    %107 = vmatprep.subr.mxu0 0.0
    %108 = vmatpush1.msra.mxu0 %v79
    %109 = vmatprep.subr.mxu0 0.0
    %110 = vmatpush1.msra.mxu0 %v80
    %111 = vmatprep.subr.mxu0 0.0
    %112 = vmatpush1.msra.mxu0 %v81
    %113 = vmatprep.subr.mxu0 0.0
    %114 = vmatpush1.msra.mxu0 %v82
    %115 = vmatprep.subr.mxu0 0.0
    %116 = vmatpush1.msra.mxu0 %v83
    %117 = vmatprep.subr.mxu0 0.0
    %118 = vmatpush1.msra.mxu0 %v84
    %119 = vmatprep.subr.mxu0 0.0
    %120 = vmatpush1.msra.mxu0 %v85
    %121 = vmatprep.subr.mxu0 0.0
    %122 = vmatpush1.msra.mxu0 %v86
    %123 = vmatprep.subr.mxu0 0.0
    %124 = vmatpush1.msra.mxu0 %v87
    %125 = vmatprep.subr.mxu0 0.0
    %126 = vmatpush1.msra.mxu0 %v88
    %127 = vmatprep.subr.mxu0 0.0
    %128 = vmatpush1.msra.mxu0 0.0
    %129 = vmatprep.subr.mxu0 0.0
    %130 = vmatpush1.msra.mxu0 0.0
    %131 = vmatprep.subr.mxu0 0.0
    %132 = vmatpush1.msra.mxu0 0.0
    %133 = vmatprep.subr.mxu0 0.0
    %134 = vmatpush1.msra.mxu0 0.0
    %135 = vmatprep.subr.mxu0 0.0
    %136 = vmatpush1.msra.mxu0 0.0
    %137 = vmatprep.subr.mxu0 0.0
    %138 = vmatpush1.msra.mxu0 0.0
    %139 = vmatprep.subr.mxu0 0.0
    %140 = vmatpush1.msra.mxu0 0.0
    %141 = vmatprep.subr.mxu0 0.0
    %142 = vmatpush1.msra.mxu0 0.0
    %143 = vmatprep.subr.mxu0 0.0
    %144 = vmatpush1.msra.mxu0 0.0
    %145 = vmatprep.subr.mxu0 0.0
    %146 = vmatpush1.msra.mxu0 0.0
    %147 = vmatprep.subr.mxu0 0.0
    %148 = vmatpush1.msra.mxu0 0.0
    %149 = vmatprep.subr.mxu0 0.0
    %150 = vmatpush1.msra.mxu0 0.0
    %151 = vmatprep.subr.mxu0 0.0
    %152 = vmatpush1.msra.mxu0 0.0
    %153 = vmatprep.subr.mxu0 0.0
    %154 = vmatpush1.msra.mxu0 0.0
    %155 = vmatprep.subr.mxu0 0.0
    %156 = vmatpush1.msra.mxu0 0.0
    %157 = vmatprep.subr.mxu0 0.0
    %158 = vmatpush1.msra.mxu0 0.0
    %159 = vmatprep.mubr.f32.mxu0 0.0
    %160 = vmatmul.mubr.f32.gmra.mrb[0].mxu0 %v71
    %v161 = vpop.f32.mrb[0].mxu0
    %v162 = vadd.f32 %v93, %v161
    %v163 = vpop.f32.mrb[0].mxu0
    %164 = vdwg.mxu0
    %v165 = vmax.f32 %v162, 0.0
    %v166 = vld [vmem:[%s4] sm:$0x1]
    %v167 = vld [vmem:[#allocation5] sm:$0xff]
    %v168 = vld [vmem:[#allocation5 + $0x8] sm:$0xff]
    %v169 = vld [vmem:[#allocation5 + $0x10] sm:$0xff]
    %v170 = vld [vmem:[#allocation5 + $0x18] sm:$0xff]
    %v171 = vld [vmem:[#allocation5 + $0x20] sm:$0xff]
    %v172 = vld [vmem:[#allocation5 + $0x28] sm:$0xff]
    %v173 = vld [vmem:[#allocation5 + $0x30] sm:$0xff]
    %v174 = vld [vmem:[#allocation5 + $0x38] sm:$0xff]
    %v175 = vld [vmem:[#allocation5 + $0x40] sm:$0xff]
    %v176 = vld [vmem:[#allocation5 + $0x48] sm:$0xff]
    %v177 = vld [vmem:[#allocation5 + $0x50] sm:$0xff]
    %v178 = vld [vmem:[#allocation5 + $0x58] sm:$0xff]
    %v179 = vld [vmem:[#allocation5 + $0x60] sm:$0xff]
    %v180 = vld [vmem:[#allocation5 + $0x68] sm:$0xff]
    %v181 = vld [vmem:[#allocation5 + $0x70] sm:$0xff]
    %v182 = vld [vmem:[#allocation5 + $0x78] sm:$0xff]
    %v184 = vlaneseq
    %v185 = vshrl.u32 %v184, 7
    %v186 = vsub.s32 0, %v185
    %v187 = vrot.slane %v166, %v186
    %189 = vmatprep.subr.mxu0 0.0
    %190 = vmatpush1.msra.mxu0 %v167
    %191 = vmatprep.subr.mxu0 0.0
    %192 = vmatpush1.msra.mxu0 %v168
    %193 = vmatprep.subr.mxu0 0.0
    %194 = vmatpush1.msra.mxu0 %v169
    %195 = vmatprep.subr.mxu0 0.0
    %196 = vmatpush1.msra.mxu0 %v170
    %197 = vmatprep.subr.mxu0 0.0
    %198 = vmatpush1.msra.mxu0 %v171
    %199 = vmatprep.subr.mxu0 0.0
    %200 = vmatpush1.msra.mxu0 %v172
    %201 = vmatprep.subr.mxu0 0.0
    %202 = vmatpush1.msra.mxu0 %v173
    %203 = vmatprep.subr.mxu0 0.0
    %204 = vmatpush1.msra.mxu0 %v174
    %205 = vmatprep.subr.mxu0 0.0
    %206 = vmatpush1.msra.mxu0 %v175
    %207 = vmatprep.subr.mxu0 0.0
    %208 = vmatpush1.msra.mxu0 %v176
    %209 = vmatprep.subr.mxu0 0.0
    %210 = vmatpush1.msra.mxu0 %v177
    %211 = vmatprep.subr.mxu0 0.0
    %212 = vmatpush1.msra.mxu0 %v178
    %213 = vmatprep.subr.mxu0 0.0
    %214 = vmatpush1.msra.mxu0 %v179
    %215 = vmatprep.subr.mxu0 0.0
    %216 = vmatpush1.msra.mxu0 %v180
    %217 = vmatprep.subr.mxu0 0.0
    %218 = vmatpush1.msra.mxu0 %v181
    %219 = vmatprep.subr.mxu0 0.0
    %220 = vmatpush1.msra.mxu0 %v182
    %221 = vmatprep.subr.mxu0 0.0
    %222 = vmatpush1.msra.mxu0 0.0
    %223 = vmatprep.subr.mxu0 0.0
    %224 = vmatpush1.msra.mxu0 0.0
    %225 = vmatprep.subr.mxu0 0.0
    %226 = vmatpush1.msra.mxu0 0.0
    %227 = vmatprep.subr.mxu0 0.0
    %228 = vmatpush1.msra.mxu0 0.0
    %229 = vmatprep.subr.mxu0 0.0
    %230 = vmatpush1.msra.mxu0 0.0
    %231 = vmatprep.subr.mxu0 0.0
    %232 = vmatpush1.msra.mxu0 0.0
    %233 = vmatprep.subr.mxu0 0.0
    %234 = vmatpush1.msra.mxu0 0.0
    %235 = vmatprep.subr.mxu0 0.0
    %236 = vmatpush1.msra.mxu0 0.0
    %237 = vmatprep.subr.mxu0 0.0
    %238 = vmatpush1.msra.mxu0 0.0
    %239 = vmatprep.subr.mxu0 0.0
    %240 = vmatpush1.msra.mxu0 0.0
    %241 = vmatprep.subr.mxu0 0.0
    %242 = vmatpush1.msra.mxu0 0.0
    %243 = vmatprep.subr.mxu0 0.0
    %244 = vmatpush1.msra.mxu0 0.0
    %245 = vmatprep.subr.mxu0 0.0
    %246 = vmatpush1.msra.mxu0 0.0
    %247 = vmatprep.subr.mxu0 0.0
    %248 = vmatpush1.msra.mxu0 0.0
    %249 = vmatprep.subr.mxu0 0.0
    %250 = vmatpush1.msra.mxu0 0.0
    %251 = vmatprep.subr.mxu0 0.0
    %252 = vmatpush1.msra.mxu0 0.0
    %253 = vmatprep.mubr.f32.mxu0 0.0
    %254 = vmatmul.mubr.f32.gmra.mrb[0].mxu0 %v165
    %v255 = vpop.f32.mrb[0].mxu0
    %v256 = vadd.f32 %v187, %v255
    %v257 = vpop.f32.mrb[0].mxu0
    %258 = vdwg.mxu0
    %v259 = vmax.f32 %v256, 0.0
    %v260 = vld [vmem:[%s6] sm:$0x1]
    %v261 = vld [vmem:[#allocation7] sm:$0xff]
    %v262 = vld [vmem:[#allocation7 + $0x8] sm:$0xff]
    %v263 = vld [vmem:[#allocation7 + $0x10] sm:$0xff]
    %v264 = vld [vmem:[#allocation7 + $0x18] sm:$0xff]
    %v265 = vld [vmem:[#allocation7 + $0x20] sm:$0xff]
    %v266 = vld [vmem:[#allocation7 + $0x28] sm:$0xff]
    %v267 = vld [vmem:[#allocation7 + $0x30] sm:$0xff]
    %v268 = vld [vmem:[#allocation7 + $0x38] sm:$0xff]
    %v269 = vld [vmem:[#allocation7 + $0x40] sm:$0xff]
    %v270 = vld [vmem:[#allocation7 + $0x48] sm:$0xff]
    %v271 = vld [vmem:[#allocation7 + $0x50] sm:$0xff]
    %v272 = vld [vmem:[#allocation7 + $0x58] sm:$0xff]
    %v273 = vld [vmem:[#allocation7 + $0x60] sm:$0xff]
    %v274 = vld [vmem:[#allocation7 + $0x68] sm:$0xff]
    %v275 = vld [vmem:[#allocation7 + $0x70] sm:$0xff]
    %v276 = vld [vmem:[#allocation7 + $0x78] sm:$0xff]
    %v278 = vlaneseq
    %v279 = vshrl.u32 %v278, 7
    %v280 = vsub.s32 0, %v279
    %v281 = vrot.slane %v260, %v280
    %283 = vmatprep.subr.mxu0 0.0
    %284 = vmatpush1.msra.mxu0 %v261
    %285 = vmatprep.subr.mxu0 0.0
    %286 = vmatpush1.msra.mxu0 %v262
    %287 = vmatprep.subr.mxu0 0.0
    %288 = vmatpush1.msra.mxu0 %v263
    %289 = vmatprep.subr.mxu0 0.0
    %290 = vmatpush1.msra.mxu0 %v264
    %291 = vmatprep.subr.mxu0 0.0
    %292 = vmatpush1.msra.mxu0 %v265
    %293 = vmatprep.subr.mxu0 0.0
    %294 = vmatpush1.msra.mxu0 %v266
    %295 = vmatprep.subr.mxu0 0.0
    %296 = vmatpush1.msra.mxu0 %v267
    %297 = vmatprep.subr.mxu0 0.0
    %298 = vmatpush1.msra.mxu0 %v268
    %299 = vmatprep.subr.mxu0 0.0
    %300 = vmatpush1.msra.mxu0 %v269
    %301 = vmatprep.subr.mxu0 0.0
    %302 = vmatpush1.msra.mxu0 %v270
    %303 = vmatprep.subr.mxu0 0.0
    %304 = vmatpush1.msra.mxu0 %v271
    %305 = vmatprep.subr.mxu0 0.0
    %306 = vmatpush1.msra.mxu0 %v272
    %307 = vmatprep.subr.mxu0 0.0
    %308 = vmatpush1.msra.mxu0 %v273
    %309 = vmatprep.subr.mxu0 0.0
    %310 = vmatpush1.msra.mxu0 %v274
    %311 = vmatprep.subr.mxu0 0.0
    %312 = vmatpush1.msra.mxu0 %v275
    %313 = vmatprep.subr.mxu0 0.0
    %314 = vmatpush1.msra.mxu0 %v276
    %315 = vmatprep.subr.mxu0 0.0
    %316 = vmatpush1.msra.mxu0 0.0
    %317 = vmatprep.subr.mxu0 0.0
    %318 = vmatpush1.msra.mxu0 0.0
    %319 = vmatprep.subr.mxu0 0.0
    %320 = vmatpush1.msra.mxu0 0.0
    %321 = vmatprep.subr.mxu0 0.0
    %322 = vmatpush1.msra.mxu0 0.0
    %323 = vmatprep.subr.mxu0 0.0
    %324 = vmatpush1.msra.mxu0 0.0
    %325 = vmatprep.subr.mxu0 0.0
    %326 = vmatpush1.msra.mxu0 0.0
    %327 = vmatprep.subr.mxu0 0.0
    %328 = vmatpush1.msra.mxu0 0.0
    %329 = vmatprep.subr.mxu0 0.0
    %330 = vmatpush1.msra.mxu0 0.0
    %331 = vmatprep.subr.mxu0 0.0
    %332 = vmatpush1.msra.mxu0 0.0
    %333 = vmatprep.subr.mxu0 0.0
    %334 = vmatpush1.msra.mxu0 0.0
    %335 = vmatprep.subr.mxu0 0.0
    %336 = vmatpush1.msra.mxu0 0.0
    %337 = vmatprep.subr.mxu0 0.0
    %338 = vmatpush1.msra.mxu0 0.0
    %339 = vmatprep.subr.mxu0 0.0
    %340 = vmatpush1.msra.mxu0 0.0
    %341 = vmatprep.subr.mxu0 0.0
    %342 = vmatpush1.msra.mxu0 0.0
    %343 = vmatprep.subr.mxu0 0.0
    %344 = vmatpush1.msra.mxu0 0.0
    %345 = vmatprep.subr.mxu0 0.0
    %346 = vmatpush1.msra.mxu0 0.0
    %347 = vmatprep.mubr.f32.mxu0 0.0
    %348 = vmatmul.mubr.f32.gmra.mrb[0].mxu0 %v259
    %v349 = vpop.f32.mrb[0].mxu0
    %v350 = vadd.f32 %v281, %v349
    %v351 = vpop.f32.mrb[0].mxu0
    %352 = vdwg.mxu0
    %v353 = vtanh.pop %v350
    %354 = vst [vmem:[#allocation2] sm:$0xff] %v353
    %v355 = vld [vmem:[#allocation2] sm:$0xff]
    %vm356 = vcmask 23552
    %357 = vst.msk [vmem:[%s7] sm:$0xff] %vm356, %v355
    // Predicated region
    $region42: #{mlp_forward.1} parent=1 // pred_check
      _
    $region43: #{mlp_forward.1} parent=1 // pred_check_branch
      %359 = sbr.rel (0) target = $region45
    $region44: #{mlp_forward.1} parent=1 // pred_region
      _
    $region45: #{mlp_forward.1} parent=1 // pred_fallthru
      _
    // Predicated region
    $region46: #{mlp_forward.1} parent=1 // pred_check
      _
    $region47: #{mlp_forward.1} parent=1 // pred_check_branch
      %361 = sbr.rel (0) target = $region49
    $region48: #{mlp_forward.1} parent=1 // pred_region
      _
    $region49: #{mlp_forward.1} parent=1 // pred_fallthru
      _
    %362 = vsyncpa [#allocation4], 1
    %363 = vsyncpa [#allocation6], 1

</llo_original>
